<compile_context>
chip_gen: v6e
topology: v6e:2x2x1
jax: 0.10.0
libtpu: 0.0.40
codegen_flags: <defaults>
</compile_context>

<pallas_src>
import functools

import jax
import jax.numpy as jnp
from jax import lax
from jax.experimental import pallas as pl
from jax.experimental.pallas import tpu as pltpu


def _round_up(x, m):
    return (x + m - 1) // m * m


def _vmem_capacity_bytes():
    """Per-TensorCore VMEM capacity, with a conservative (v7x) fallback."""
    try:
        info = pltpu.get_tpu_info()
        cap = getattr(info, "vmem_capacity_bytes", None)
        if cap:
            return int(cap)
    except Exception:
        pass
    return 64 * 1024 * 1024  # v7x has the smallest VMEM of v5e / v6e / v7x


def _vmem_limit_bytes(vmem_cap):
    return int(min(vmem_cap * 3 // 4, 100 * (1 << 20)))


def _pick_tile_rows(n_rows, bytes_per_row, vmem_cap, row_cap):
    # One input block should be ~0.5-2 MiB so the per-grid-step overhead is amortized,
    # while 3 inputs x 2 pipeline buffers (+ f32 temporaries) stay well inside VMEM.
    block_budget = max(1 << 19, min(2 << 20, vmem_cap // 24))
    rows = block_budget // max(1, bytes_per_row)
    rows = min(rows, row_cap)
    # Guarantee >= 2 grid steps (when there are enough rows) so the "parallel" grid
    # axis can be sharded across v7x's two TensorCores; harmless on 1-TC chips.
    half = _round_up(n_rows, 16) // 2
    half = max(16, (half // 16) * 16)
    rows = min(rows, half)
    # Multiple of 16: bf16 packs two rows per sublane, so the packed tile is (16, 128).
    return max(16, (rows // 16) * 16)


# --------------------------------------------------------------------------------------
# Fused path: tables resident in VMEM, gather + distance in a single kernel.
# --------------------------------------------------------------------------------------

_FUSED_TABLE_BYTES_MAX = 4 << 20   # both tables must fit comfortably in VMEM
_FUSED_MAX_TABLE_ROWS = 4096       # keep the one-hot MXU gather cheap


def _transe_fused_kernel(hi_ref, ri_ref, ti_ref, ent_ref, rel_ref, d_ref):
    ent = ent_ref[...]   # (n_ent_pad, d_pad) bf16, VMEM-resident across grid steps
    rel = rel_ref[...]   # (n_rel_pad, d_pad) bf16, VMEM-resident across grid steps

    def gather(idx_col, table):
        # One-hot MXU gather. 0/1 are exact in bf16 and the MXU accumulates in f32, so
        # the result is exactly the bf16 row upcast to f32. The kernel is memory-bound
        # with full MXU slack, so this is effectively free for the small tables this
        # path is restricted to.
        tile = idx_col.shape[0]
        iota = lax.broadcasted_iota(jnp.int32, (tile, table.shape[0]), 1)
        onehot = (idx_col == iota).astype(table.dtype)       # (tile, n_rows) bf16
        return jnp.dot(onehot, table, preferred_element_type=jnp.float32)

    h = gather(hi_ref[...], ent)     # (tile, d_pad) f32
    r = gather(ri_ref[...], rel)
    t = gather(ti_ref[...], ent)
    diff = h + r - t
    # L2 norm over the (lane) embedding axis; zero-padded lanes/rows add nothing.
    d_ref[...] = jnp.sqrt(jnp.sum(diff * diff, axis=1, keepdims=True))


def _fused_distances(head_idx, rel_idx, tail_idx, ent, rel, vmem_cap):
    n = head_idx.shape[0]
    d_pad = ent.shape[1]

    tile_rows = _pick_tile_rows(n, 3 * 4 + 4, vmem_cap, row_cap=1024)
    n_pad = _round_up(n, tile_rows)

    def prep_idx(idx):
        idx = idx.astype(jnp.int32)
        if n_pad != n:
            idx = jnp.pad(idx, (0, n_pad - n))   # padded rows gather row 0; sliced off
        return idx.reshape(n_pad, 1)

    hi, ri, ti = prep_idx(head_idx), prep_idx(rel_idx), prep_idx(tail_idx)

    # Zero-pad table rows up to a multiple of 128 so both matmul operands are cleanly
    # aligned; the zero rows are never selected and contribute nothing anyway.
    def pad_rows(tbl):
        rows = tbl.shape[0]
        rows_pad = _round_up(rows, 128)
        if rows_pad != rows:
            tbl = jnp.pad(tbl, ((0, rows_pad - rows), (0, 0)))
        return tbl

    ent_p, rel_p = pad_rows(ent), pad_rows(rel)

    grid = (n_pad // tile_rows,)
    idx_spec = pl.BlockSpec((tile_rows, 1), lambda i: (i, 0))
    ent_spec = pl.BlockSpec(ent_p.shape, lambda i: (0, 0))   # same block every step
    rel_spec = pl.BlockSpec(rel_p.shape, lambda i: (0, 0))   # -> fetched once
    out_spec = pl.BlockSpec((tile_rows, 1), lambda i: (i, 0))
    # TODO(synk): output last-dim is 1 (masked vst); a lane-dense (1, tile_rows)
    # writeback would need an in-kernel transpose and saves <1% of HBM bytes here.

    dist = pl.pallas_call(
        _transe_fused_kernel,
        out_shape=jax.ShapeDtypeStruct((n_pad, 1), jnp.float32),
        grid=grid,
        in_specs=[idx_spec, idx_spec, idx_spec, ent_spec, rel_spec],
        out_specs=out_spec,
        compiler_params=pltpu.CompilerParams(
            dimension_semantics=("parallel",),
            vmem_limit_bytes=_vmem_limit_bytes(vmem_cap)),
    )(hi, ri, ti, ent_p, rel_p)
    return dist[:n, 0]


# --------------------------------------------------------------------------------------
# Streaming fallback: XLA gather feeds bf16 row streams (used for large tables).
# --------------------------------------------------------------------------------------

def _transe_stream_kernel(h_ref, r_ref, t_ref, d_ref):
    # Upcast to f32 right after load (v5e VPU has no bf16 ALU); all math in f32.
    h = h_ref[...].astype(jnp.float32)
    r = r_ref[...].astype(jnp.float32)
    t = t_ref[...].astype(jnp.float32)
    diff = h + r - t
    d_ref[...] = jnp.sqrt(jnp.sum(diff * diff, axis=1, keepdims=True))


def _stream_distances(head_idx, rel_idx, tail_idx, ent, rel, vmem_cap):
    # TODO(synk): for huge tables a fully fused variant would DMA-gather rows from
    # tables left in memory_space=pl.ANY; here the gather stays in XLA but only the
    # tiny int32 index vectors are padded (never the (N, D) gathered rows), so the
    # gather output is already grid-aligned and consumed directly by the kernel.
    n = head_idx.shape[0]
    d_pad = ent.shape[1]

    tile_rows = _pick_tile_rows(n, d_pad * ent.dtype.itemsize, vmem_cap, row_cap=8192)
    n_pad = _round_up(n, tile_rows)

    def prep_idx(idx):
        idx = idx.astype(jnp.int32)
        if n_pad != n:
            idx = jnp.pad(idx, (0, n_pad - n))
        return idx

    h = jnp.take(ent, prep_idx(head_idx), axis=0)
    r = jnp.take(rel, prep_idx(rel_idx), axis=0)
    t = jnp.take(ent, prep_idx(tail_idx), axis=0)

    grid = (n_pad // tile_rows,)
    in_spec = pl.BlockSpec((tile_rows, d_pad), lambda i: (i, 0))
    out_spec = pl.BlockSpec((tile_rows, 1), lambda i: (i, 0))

    dist = pl.pallas_call(
        _transe_stream_kernel,
        out_shape=jax.ShapeDtypeStruct((n_pad, 1), jnp.float32),
        grid=grid,
        in_specs=[in_spec, in_spec, in_spec],
        out_specs=out_spec,
        compiler_params=pltpu.CompilerParams(
            dimension_semantics=("parallel",),
            vmem_limit_bytes=_vmem_limit_bytes(vmem_cap)),
    )(h, r, t)
    return dist[:n, 0]


@functools.partial(jax.jit, static_argnames=("force_streaming",))
def transe_distances(head_idx, rel_idx, tail_idx, ent_embs, rel_embs, *,
                     force_streaming=False):
    """|| ent[head] + rel[rel] - ent[tail] ||_2 for each row; returns (N,) f32."""
    d = ent_embs.shape[1]
    d_pad = _round_up(d, 128)
    if d_pad != d:  # no-op when the model already stores 128-lane-padded tables
        ent_embs = jnp.pad(ent_embs, ((0, 0), (0, d_pad - d)))
        rel_embs = jnp.pad(rel_embs, ((0, 0), (0, d_pad - d)))

    vmem_cap = _vmem_capacity_bytes()
    table_bytes = (ent_embs.size * ent_embs.dtype.itemsize
                   + rel_embs.size * rel_embs.dtype.itemsize)
    use_fused = (not force_streaming
                 and table_bytes <= _FUSED_TABLE_BYTES_MAX
                 and max(ent_embs.shape[0], rel_embs.shape[0]) <= _FUSED_MAX_TABLE_ROWS)
    if use_fused:
        return _fused_distances(head_idx, rel_idx, tail_idx, ent_embs, rel_embs, vmem_cap)
    return _stream_distances(head_idx, rel_idx, tail_idx, ent_embs, rel_embs, vmem_cap)


# --------------------------------------------------------------------------------------
# Model wrapper (port of the PyTorch TransEModel forward pass).
# --------------------------------------------------------------------------------------

class TransEModelPallas:
    def __init__(self, n_entities, n_relations, emb_dim=100, margin=1.0, p_norm=1,
                 param_dtype=jnp.bfloat16, key=None):
        self.n_entities = n_entities
        self.n_relations = n_relations
        self.embedding_dim = emb_dim
        self.margin = margin
        # p_norm is accepted but unused by forward(); torch.norm defaults to p=2.
        self.p_norm = p_norm
        self.param_dtype = param_dtype

        if key is None:
            key = jax.random.PRNGKey(0)
        k_ent, k_rel = jax.random.split(key)
        # xavier_uniform_: bound = sqrt(6 / (fan_in + fan_out))
        ent_bound = (6.0 / (n_entities + emb_dim)) ** 0.5
        rel_bound = (6.0 / (n_relations + emb_dim)) ** 0.5
        ent = jax.random.uniform(k_ent, (n_entities, emb_dim), jnp.float32,
                                 -ent_bound, ent_bound)
        rel = jax.random.uniform(k_rel, (n_relations, emb_dim), jnp.float32,
                                 -rel_bound, rel_bound)
        # Zero-pad the embedding axis to a multiple of 128 lanes; the zero columns
        # never perturb the squared sum. Tables are stored in bf16 (param_dtype) to
        # halve HBM reads; keep an f32 param_dtype if tighter parity is required.
        d_pad = _round_up(emb_dim, 128)
        ent = jnp.pad(ent, ((0, 0), (0, d_pad - emb_dim)))
        rel = jnp.pad(rel, ((0, 0), (0, d_pad - emb_dim)))
        self.ent_embs = ent.astype(param_dtype)
        self.rel_embs = rel.astype(param_dtype)

    def __call__(self, pos_triples, neg_triples):
        pos_triples = jnp.asarray(pos_triples)
        neg_triples = jnp.asarray(neg_triples)
        b = pos_triples.shape[0]
        # Fuse the positive and negative streams: rows are ordered [pos; neg] so a
        # single kernel call computes both and the wrapper just splits at b.
        heads = jnp.concatenate([pos_triples[:, 0], neg_triples[:, 0]])
        rels = jnp.concatenate([pos_triples[:, 1], neg_triples[:, 1]])
        tails = jnp.concatenate([pos_triples[:, 2], neg_triples[:, 2]])
        dist = transe_distances(heads, rels, tails, self.ent_embs, self.rel_embs)
        return dist[:b], dist[b:]


if __name__ == "__main__":
    n_entities, n_relations, emb_dim, batch = 64, 16, 100, 32

    key = jax.random.PRNGKey(0)
    k_model, k_pos, k_neg = jax.random.split(key, 3)
    model = TransEModelPallas(n_entities, n_relations, emb_dim=emb_dim, key=k_model)

    kp_h, kp_r, kp_t = jax.random.split(k_pos, 3)
    kn_h, kn_r, kn_t = jax.random.split(k_neg, 3)
    pos_triples = jnp.stack([
        jax.random.randint(kp_h, (batch,), 0, n_entities),
        jax.random.randint(kp_r, (batch,), 0, n_relations),
        jax.random.randint(kp_t, (batch,), 0, n_entities),
    ], axis=1).astype(jnp.int32)
    neg_triples = jnp.stack([
        jax.random.randint(kn_h, (batch,), 0, n_entities),
        jax.random.randint(kn_r, (batch,), 0, n_relations),
        jax.random.randint(kn_t, (batch,), 0, n_entities),
    ], axis=1).astype(jnp.int32)

    # Fused (gather-in-kernel) path — chosen automatically for these small tables.
    pos_dist, neg_dist = model(pos_triples, neg_triples)
    jax.block_until_ready((pos_dist, neg_dist))
    assert pos_dist.shape == (batch,) and neg_dist.shape == (batch,)

    # ---------------- reference checks (plain JAX, f32 math on the bf16 tables) ------
    def ref(triples):
        h = jnp.take(model.ent_embs, triples[:, 0], axis=0).astype(jnp.float32)
        r = jnp.take(model.rel_embs, triples[:, 1], axis=0).astype(jnp.float32)
        t = jnp.take(model.ent_embs, triples[:, 2], axis=0).astype(jnp.float32)
        return jnp.linalg.norm(h + r - t, axis=1)   # zero-padded lanes add nothing

    assert jnp.allclose(pos_dist, ref(pos_triples), rtol=1e-3, atol=1e-3)
    assert jnp.allclose(neg_dist, ref(neg_triples), rtol=1e-3, atol=1e-3)

    # Also exercise the streaming fallback (the path used for large tables).
    heads = jnp.concatenate([pos_triples[:, 0], neg_triples[:, 0]])
    rels = jnp.concatenate([pos_triples[:, 1], neg_triples[:, 1]])
    tails = jnp.concatenate([pos_triples[:, 2], neg_triples[:, 2]])
    stream_dist = transe_distances(heads, rels, tails, model.ent_embs, model.rel_embs,
                                   force_streaming=True)
    jax.block_until_ready(stream_dist)
    full_ref = jnp.concatenate([ref(pos_triples), ref(neg_triples)])
    assert jnp.allclose(stream_dist, full_ref, rtol=1e-3, atol=1e-3)

    print("KERNEL_OK")
</pallas_src>

<mosaic_0001>
module attributes {stable_mosaic.version = 11 : i64} {
  func.func @_transe_fused_kernel(%arg0: i32, %arg1: memref<32x1xi32, #tpu.memory_space<vmem>>, %arg2: memref<32x1xi32, #tpu.memory_space<vmem>>, %arg3: memref<32x1xi32, #tpu.memory_space<vmem>>, %arg4: memref<128x128xbf16, #tpu.memory_space<vmem>>, %arg5: memref<128x128xbf16, #tpu.memory_space<vmem>>, %arg6: memref<32x1xf32, #tpu.memory_space<vmem>>) attributes {dimension_semantics = [#tpu.dimension_semantics<parallel>], iteration_bounds = array<i64: 2>, scalar_prefetch = 0 : i64, scratch_operands = 0 : i64, tpu.core_type = #tpu.core_type<tc>, window_params = [{transform_indices = @transform_0, window_bounds = array<i64: 32, 1>}, {transform_indices = @transform_1, window_bounds = array<i64: 32, 1>}, {transform_indices = @transform_2, window_bounds = array<i64: 32, 1>}, {pipeline_mode = #tpu.pipeline_mode<synchronous>, transform_indices = @transform_3, window_bounds = array<i64: 128, 128>}, {pipeline_mode = #tpu.pipeline_mode<synchronous>, transform_indices = @transform_4, window_bounds = array<i64: 128, 128>}, {transform_indices = @transform_5, window_bounds = array<i64: 32, 1>}]} {
    %c0 = arith.constant 0 : index
    %c0_0 = arith.constant 0 : index
    %0 = vector.load %arg4[%c0, %c0_0] : memref<128x128xbf16, #tpu.memory_space<vmem>>, vector<128x128xbf16>
    %c0_1 = arith.constant 0 : index
    %c0_2 = arith.constant 0 : index
    %1 = vector.load %arg5[%c0_1, %c0_2] : memref<128x128xbf16, #tpu.memory_space<vmem>>, vector<128x128xbf16>
    %c0_3 = arith.constant 0 : index
    %c0_4 = arith.constant 0 : index
    %2 = vector.load %arg1[%c0_3, %c0_4] : memref<32x1xi32, #tpu.memory_space<vmem>>, vector<32x1xi32>
    %3 = tpu.iota {dimensions = array<i32: 1>} : vector<32x128xi32>
    %4 = vector.broadcast %2 : vector<32x1xi32> to vector<32x128xi32>
    %5 = arith.cmpi eq, %4, %3 : vector<32x128xi32>
    %6 = arith.extui %5 : vector<32x128xi1> to vector<32x128xi32>
    %7 = arith.sitofp %6 : vector<32x128xi32> to vector<32x128xf32>
    %8 = arith.truncf %7 : vector<32x128xf32> to vector<32x128xbf16>
    %cst = arith.constant dense<0.000000e+00> : vector<32x128xf32>
    %9 = tpu.matmul %8, %0, %cst {dimension_numbers = #tpu.dot_dimension_numbers<[1], [0], [0], [1], [0, 0, 1, 1], [], []>} : vector<32x128xbf16>, vector<128x128xbf16>, vector<32x128xf32> -> vector<32x128xf32>
    %c0_5 = arith.constant 0 : index
    %c0_6 = arith.constant 0 : index
    %10 = vector.load %arg2[%c0_5, %c0_6] : memref<32x1xi32, #tpu.memory_space<vmem>>, vector<32x1xi32>
    %11 = tpu.iota {dimensions = array<i32: 1>} : vector<32x128xi32>
    %12 = vector.broadcast %10 : vector<32x1xi32> to vector<32x128xi32>
    %13 = arith.cmpi eq, %12, %11 : vector<32x128xi32>
    %14 = arith.extui %13 : vector<32x128xi1> to vector<32x128xi32>
    %15 = arith.sitofp %14 : vector<32x128xi32> to vector<32x128xf32>
    %16 = arith.truncf %15 : vector<32x128xf32> to vector<32x128xbf16>
    %cst_7 = arith.constant dense<0.000000e+00> : vector<32x128xf32>
    %17 = tpu.matmul %16, %1, %cst_7 {dimension_numbers = #tpu.dot_dimension_numbers<[1], [0], [0], [1], [0, 0, 1, 1], [], []>} : vector<32x128xbf16>, vector<128x128xbf16>, vector<32x128xf32> -> vector<32x128xf32>
    %c0_8 = arith.constant 0 : index
    %c0_9 = arith.constant 0 : index
    %18 = vector.load %arg3[%c0_8, %c0_9] : memref<32x1xi32, #tpu.memory_space<vmem>>, vector<32x1xi32>
    %19 = tpu.iota {dimensions = array<i32: 1>} : vector<32x128xi32>
    %20 = vector.broadcast %18 : vector<32x1xi32> to vector<32x128xi32>
    %21 = arith.cmpi eq, %20, %19 : vector<32x128xi32>
    %22 = arith.extui %21 : vector<32x128xi1> to vector<32x128xi32>
    %23 = arith.sitofp %22 : vector<32x128xi32> to vector<32x128xf32>
    %24 = arith.truncf %23 : vector<32x128xf32> to vector<32x128xbf16>
    %cst_10 = arith.constant dense<0.000000e+00> : vector<32x128xf32>
    %25 = tpu.matmul %24, %0, %cst_10 {dimension_numbers = #tpu.dot_dimension_numbers<[1], [0], [0], [1], [0, 0, 1, 1], [], []>} : vector<32x128xbf16>, vector<128x128xbf16>, vector<32x128xf32> -> vector<32x128xf32>
    %26 = arith.addf %9, %17 : vector<32x128xf32>
    %27 = arith.subf %26, %25 : vector<32x128xf32>
    %28 = arith.mulf %27, %27 : vector<32x128xf32>
    %cst_11 = arith.constant dense<0.000000e+00> : vector<32xf32>
    %29 = vector.multi_reduction <add>, %28, %cst_11 [1] : vector<32x128xf32> to vector<32xf32>
    %30 = vector.shape_cast %29 : vector<32xf32> to vector<32x1xf32>
    %31 = math.sqrt %30 : vector<32x1xf32>
    %c0_12 = arith.constant 0 : index
    %c0_13 = arith.constant 0 : index
    %32 = vector.load %arg6[%c0_12, %c0_13] : memref<32x1xf32, #tpu.memory_space<vmem>>, vector<32x1xf32>
    tpu.vector_store %arg6[%c0_12, %c0_13], %31 {strides = array<i32>} : memref<32x1xf32, #tpu.memory_space<vmem>>, vector<32x1xf32>,
    return
  }
  func.func @transform_0(%arg0: i32) -> (i32, i32) {
    %c0_i32 = arith.constant 0 : i32
    %c0_i32_0 = arith.constant 0 : i32
    return %arg0, %c0_i32 : i32, i32
  }
  func.func @transform_1(%arg0: i32) -> (i32, i32) {
    %c0_i32 = arith.constant 0 : i32
    %c0_i32_0 = arith.constant 0 : i32
    return %arg0, %c0_i32 : i32, i32
  }
  func.func @transform_2(%arg0: i32) -> (i32, i32) {
    %c0_i32 = arith.constant 0 : i32
    %c0_i32_0 = arith.constant 0 : i32
    return %arg0, %c0_i32 : i32, i32
  }
  func.func @transform_3(%arg0: i32) -> (i32, i32) {
    %c0_i32 = arith.constant 0 : i32
    %c0_i32_0 = arith.constant 0 : i32
    %c0_i32_1 = arith.constant 0 : i32
    return %c0_i32, %c0_i32_0 : i32, i32
  }
  func.func @transform_4(%arg0: i32) -> (i32, i32) {
    %c0_i32 = arith.constant 0 : i32
    %c0_i32_0 = arith.constant 0 : i32
    %c0_i32_1 = arith.constant 0 : i32
    return %c0_i32, %c0_i32_0 : i32, i32
  }
  func.func @transform_5(%arg0: i32) -> (i32, i32) {
    %c0_i32 = arith.constant 0 : i32
    %c0_i32_0 = arith.constant 0 : i32
    return %arg0, %c0_i32 : i32, i32
  }
}

</mosaic_0001>

<llo_original>
// kernel: transe_distances.1
$region0: #{transe_distances.1}
  #allocation0 [shape = 'u32[]', space=smem, size = 0x4, offset = 0x4, fixed_abs, tag = 'smem constant byte address 0x4 - core index']
  #allocation1 [shape = 'u32[144,128]{1,0:T(1,128)}', space=vmem, size = 0x12000, scoped, tag = 'internal scratch']
  %s0 = inlined_call_operand.vmem [shape: s32[64,1], index: 0, kind: input, shape index: {}]
  %s1 = inlined_call_operand.vmem [shape: s32[64,1], index: 1, kind: input, shape index: {}]
  %s2 = inlined_call_operand.vmem [shape: s32[64,1], index: 2, kind: input, shape index: {}]
  %s3 = inlined_call_operand.vmem [shape: bf16[128,128], index: 3, kind: input, shape index: {}]
  %s4 = inlined_call_operand.vmem [shape: bf16[128,128], index: 4, kind: input, shape index: {}]
  %s5 = inlined_call_operand.vmem [shape: f32[64,1], index: 5, kind: output, shape index: {}]
  %s6 = sld [smem:[#allocation0]]
  $region53: #{transe_distances.1} parent=0
    _
  %s8 = ssub.s32 1, %s6
  %s9 = scalar_select 0, %s8, %s6
  loop: start=0, step=1, limit=4
  $region2: #{transe_distances.1} parent=0 // loop_pre_header
    _
  $region3: #{transe_distances.1} parent=0 // loop_header
    %s11 = sphi 0, %s15
    %p12 = scmp.ge.s32.totalorder %s11, 4
    %s21 = sphi 0, %s23
    %s24 = sphi 0, %s21
    %s25 = sphi 0, %s24
    %s41 = sphi 0, %s25
    %s47 = sphi 0, %s49
    %s50 = sphi 0, %s47
    %s51 = sphi 0, %s50
    %s67 = sphi 0, %s51
    %s73 = sphi 0, %s75
    %s76 = sphi 0, %s73
    %s77 = sphi 0, %s76
    %s93 = sphi 0, %s77
    %s97 = sphi 0, %s97
    %s99 = sphi 0, %s97
    %s100 = sphi 0, %s99
    %s114 = sphi 0, %s100
    %s118 = sphi 0, %s118
    %s120 = sphi 0, %s118
    %s121 = sphi 0, %s120
    %s135 = sphi 0, %s121
    %s141 = sphi 0, %s143
    %s144 = sphi 0, %s141
    %s145 = sphi 0, %s144
    %s161 = sphi 0, %s145
  $region4: #{transe_distances.1} parent=0 // loop_header_branch
    %14 = sbr.rel (%p12) target = $region8
  $region5: #{transe_distances.1} parent=0 // loop_body
    %s16 = ssub.s32 %s11, 1
    %s17 = ssub.s32 %s11, 2
    %s18 = sadd.s32 %s11, 1
    %s19 = ssub.s32 %s11, %s18
    %p20 = scmp.eq.s32.totalorder %s19, 0
    %s22 = sadd.s32 %s21, 1
    %s23 = scalar_select %p20, %s21, %s22
    %p26 = pneg %p20
    %p27 = scmp.eq.s32.totalorder %s11, 1
    %p28 = por %p26, %p27
    %p29 = scmp.ne.s32.totalorder %s21, %s24
    %p30 = scmp.eq.s32.totalorder %s11, 0
    %p31 = por %p29, %p30
    %p32 = scmp.ne.s32.totalorder %s21, %s24
    %p33 = scmp.eq.s32.totalorder %s16, 1
    %p34 = por %p32, %p33
    %p35 = scmp.ne.s32.totalorder %s24, %s25
    %p36 = scmp.eq.s32.totalorder %s16, 0
    %p37 = por %p35, %p36
    %p38 = scmp.ne.s32.totalorder %s24, %s25
    %p39 = scmp.eq.s32.totalorder %s17, 1
    %p40 = por %p38, %p39
    %p42 = scmp.ne.s32.totalorder %s25, %s41
    %p43 = scmp.eq.s32.totalorder %s17, 0
    %p44 = por %p42, %p43
    %s45 = ssub.s32 %s11, %s18
    %p46 = scmp.eq.s32.totalorder %s45, 0
    %s48 = sadd.s32 %s47, 1
    %s49 = scalar_select %p46, %s47, %s48
    %p52 = pneg %p46
    %p53 = scmp.eq.s32.totalorder %s11, 1
    %p54 = por %p52, %p53
    %p55 = scmp.ne.s32.totalorder %s47, %s50
    %p56 = scmp.eq.s32.totalorder %s11, 0
    %p57 = por %p55, %p56
    %p58 = scmp.ne.s32.totalorder %s47, %s50
    %p59 = scmp.eq.s32.totalorder %s16, 1
    %p60 = por %p58, %p59
    %p61 = scmp.ne.s32.totalorder %s50, %s51
    %p62 = scmp.eq.s32.totalorder %s16, 0
    %p63 = por %p61, %p62
    %p64 = scmp.ne.s32.totalorder %s50, %s51
    %p65 = scmp.eq.s32.totalorder %s17, 1
    %p66 = por %p64, %p65
    %p68 = scmp.ne.s32.totalorder %s51, %s67
    %p69 = scmp.eq.s32.totalorder %s17, 0
    %p70 = por %p68, %p69
    %s71 = ssub.s32 %s11, %s18
    %p72 = scmp.eq.s32.totalorder %s71, 0
    %s74 = sadd.s32 %s73, 1
    %s75 = scalar_select %p72, %s73, %s74
    %p78 = pneg %p72
    %p79 = scmp.eq.s32.totalorder %s11, 1
    %p80 = por %p78, %p79
    %p81 = scmp.ne.s32.totalorder %s73, %s76
    %p82 = scmp.eq.s32.totalorder %s11, 0
    %p83 = por %p81, %p82
    %p84 = scmp.ne.s32.totalorder %s73, %s76
    %p85 = scmp.eq.s32.totalorder %s16, 1
    %p86 = por %p84, %p85
    %p87 = scmp.ne.s32.totalorder %s76, %s77
    %p88 = scmp.eq.s32.totalorder %s16, 0
    %p89 = por %p87, %p88
    %p90 = scmp.ne.s32.totalorder %s76, %s77
    %p91 = scmp.eq.s32.totalorder %s17, 1
    %p92 = por %p90, %p91
    %p94 = scmp.ne.s32.totalorder %s77, %s93
    %p95 = scmp.eq.s32.totalorder %s17, 0
    %p96 = por %p94, %p95
    %s98 = sadd.s32 %s97, 1
    %p101 = scmp.eq.s32.totalorder %s11, 1
    %p102 = scmp.ne.s32.totalorder %s97, %s99
    %p103 = scmp.eq.s32.totalorder %s11, 0
    %p104 = por %p102, %p103
    %p105 = scmp.ne.s32.totalorder %s97, %s99
    %p106 = scmp.eq.s32.totalorder %s16, 1
    %p107 = por %p105, %p106
    %p108 = scmp.ne.s32.totalorder %s99, %s100
    %p109 = scmp.eq.s32.totalorder %s16, 0
    %p110 = por %p108, %p109
    %p111 = scmp.ne.s32.totalorder %s99, %s100
    %p112 = scmp.eq.s32.totalorder %s17, 1
    %p113 = por %p111, %p112
    %p115 = scmp.ne.s32.totalorder %s100, %s114
    %p116 = scmp.eq.s32.totalorder %s17, 0
    %p117 = por %p115, %p116
    %s119 = sadd.s32 %s118, 1
    %p122 = scmp.eq.s32.totalorder %s11, 1
    %p123 = scmp.ne.s32.totalorder %s118, %s120
    %p124 = scmp.eq.s32.totalorder %s11, 0
    %p125 = por %p123, %p124
    %p126 = scmp.ne.s32.totalorder %s118, %s120
    %p127 = scmp.eq.s32.totalorder %s16, 1
    %p128 = por %p126, %p127
    %p129 = scmp.ne.s32.totalorder %s120, %s121
    %p130 = scmp.eq.s32.totalorder %s16, 0
    %p131 = por %p129, %p130
    %p132 = scmp.ne.s32.totalorder %s120, %s121
    %p133 = scmp.eq.s32.totalorder %s17, 1
    %p134 = por %p132, %p133
    %p136 = scmp.ne.s32.totalorder %s121, %s135
    %p137 = scmp.eq.s32.totalorder %s17, 0
    %p138 = por %p136, %p137
    %s139 = ssub.s32 %s11, %s18
    %p140 = scmp.eq.s32.totalorder %s139, 0
    %s142 = sadd.s32 %s141, 1
    %s143 = scalar_select %p140, %s141, %s142
    %p146 = pneg %p140
    %p147 = scmp.eq.s32.totalorder %s11, 1
    %p148 = por %p146, %p147
    %p149 = scmp.ne.s32.totalorder %s141, %s144
    %p150 = scmp.eq.s32.totalorder %s11, 0
    %p151 = por %p149, %p150
    %p152 = scmp.ne.s32.totalorder %s141, %s144
    %p153 = scmp.eq.s32.totalorder %s16, 1
    %p154 = por %p152, %p153
    %p155 = scmp.ne.s32.totalorder %s144, %s145
    %p156 = scmp.eq.s32.totalorder %s16, 0
    %p157 = por %p155, %p156
    %p158 = scmp.ne.s32.totalorder %s144, %s145
    %p159 = scmp.eq.s32.totalorder %s17, 1
    %p160 = por %p158, %p159
    %p162 = scmp.ne.s32.totalorder %s145, %s161
    %p163 = scmp.eq.s32.totalorder %s17, 0
    %p164 = por %p162, %p163
    %p165 = scmp.le.s32.totalorder 1, %s11
    %p166 = scmp.lt.s32.totalorder %s11, 3
    %p167 = pnand %p165, %p166
    %p168 = pneg %p167
    // Predicated region
    $region9: #{transe_distances.1} parent=5 // pred_check
      _
    $region10: #{transe_distances.1} parent=5 // pred_check_branch
      %170 = sbr.rel (%p167) target = $region12
    $region11: #{transe_distances.1} parent=5 // pred_region
      %s171 = ssub.s32 %s11, 1
      // Predicated region
      $region13: #{transe_distances.1} parent=11 // pred_check
        %p172 = pneg %p110
      $region14: #{transe_distances.1} parent=11 // pred_check_branch
        %174 = sbr.rel (%p172) target = $region16
      $region15: #{transe_distances.1} parent=11 // pred_region
        _
      $region16: #{transe_distances.1} parent=11 // pred_fallthru
        _
      // Predicated region
      $region17: #{transe_distances.1} parent=11 // pred_check
        %p175 = pneg %p131
      $region18: #{transe_distances.1} parent=11 // pred_check_branch
        %177 = sbr.rel (%p175) target = $region20
      $region19: #{transe_distances.1} parent=11 // pred_region
        _
      $region20: #{transe_distances.1} parent=11 // pred_fallthru
        _
    $region12: #{transe_distances.1} parent=5 // pred_fallthru
      _
    %p178 = scmp.lt.s32.totalorder %s11, 2
    // Predicated region
    $region21: #{transe_distances.1} parent=5 // pred_check
      %p179 = pneg %p178
    $region22: #{transe_distances.1} parent=5 // pred_check_branch
      %181 = sbr.rel (%p179) target = $region24
    $region23: #{transe_distances.1} parent=5 // pred_region
      // Predicated region
      $region25: #{transe_distances.1} parent=23 // pred_check
        %p182 = pneg %p31
      $region26: #{transe_distances.1} parent=23 // pred_check_branch
        %184 = sbr.rel (%p182) target = $region28
      $region27: #{transe_distances.1} parent=23 // pred_region
        %s185 = smul.u32 4, %s11
        %p186 = scmp.lt.s32.totalorder %s185, 7
        %s187 = scalar_select %p186, %s185, 7
        %s188 = smul.addr %s187, 8
        %s189 = scalar_lea.vmem %s0, %s188
        %s190 = smul.u32 4, %s11
      $region28: #{transe_distances.1} parent=23 // pred_fallthru
        _
      // Predicated region
      $region29: #{transe_distances.1} parent=23 // pred_check
        %p191 = pneg %p57
      $region30: #{transe_distances.1} parent=23 // pred_check_branch
        %193 = sbr.rel (%p191) target = $region32
      $region31: #{transe_distances.1} parent=23 // pred_region
        %s194 = smul.u32 4, %s11
        %p195 = scmp.lt.s32.totalorder %s194, 7
        %s196 = scalar_select %p195, %s194, 7
        %s197 = smul.addr %s196, 8
        %s198 = scalar_lea.vmem %s1, %s197
        %s199 = smul.u32 4, %s11
      $region32: #{transe_distances.1} parent=23 // pred_fallthru
        _
      // Predicated region
      $region33: #{transe_distances.1} parent=23 // pred_check
        %p200 = pneg %p83
      $region34: #{transe_distances.1} parent=23 // pred_check_branch
        %202 = sbr.rel (%p200) target = $region36
      $region35: #{transe_distances.1} parent=23 // pred_region
        %s203 = smul.u32 4, %s11
        %p204 = scmp.lt.s32.totalorder %s203, 7
        %s205 = scalar_select %p204, %s203, 7
        %s206 = smul.addr %s205, 8
        %s207 = scalar_lea.vmem %s2, %s206
        %s208 = smul.u32 4, %s11
      $region36: #{transe_distances.1} parent=23 // pred_fallthru
        _
    $region24: #{transe_distances.1} parent=5 // pred_fallthru
      _
    %p209 = scmp.le.s32.totalorder 1, %s11
    %p210 = scmp.lt.s32.totalorder %s11, 3
    %p211 = pnand %p209, %p210
    %p212 = pneg %p211
    // Predicated region
    $region37: #{transe_distances.1} parent=5 // pred_check
      _
    $region38: #{transe_distances.1} parent=5 // pred_check_branch
      %214 = sbr.rel (%p211) target = $region40
    $region39: #{transe_distances.1} parent=5 // pred_region
      %s215 = ssub.s32 %s11, 1
      %s216 = smul.u32 4, %s16
      %p217 = scmp.lt.s32.totalorder %s216, 7
      %s218 = scalar_select %p217, %s216, 7
      %s219 = smul.addr %s218, 8
      %s220 = scalar_lea.vmem %s0, %s219
      %p221 = pneg %p37
      %p222 = pneg %p34
      %s223 = smul.u32 4, %s16
      %p224 = scmp.lt.s32.totalorder %s223, 7
      %s225 = scalar_select %p224, %s223, 7
      %s226 = smul.addr %s225, 8
      %s227 = scalar_lea.vmem %s1, %s226
      %p228 = pneg %p63
      %p229 = pneg %p60
      %s230 = smul.u32 4, %s16
      %p231 = scmp.lt.s32.totalorder %s230, 7
      %s232 = scalar_select %p231, %s230, 7
      %s233 = smul.addr %s232, 8
      %s234 = scalar_lea.vmem %s2, %s233
      %p235 = pneg %p89
      %p236 = pneg %p86
      %p237 = pneg %p110
      %p238 = pneg %p107
      %p239 = pneg %p131
      %p240 = pneg %p128
      %p241 = pneg %p157
      %p242 = pneg %p154
      %s243 = smul.u32 4, %s16
      %p244 = scmp.lt.s32.totalorder %s243, 7
      %s245 = scalar_select %p244, %s243, 7
      %s246 = smul.addr %s245, 8
      %s247 = scalar_lea.vmem %s5, %s246
      %s248 = smul.u32 4, %s16
      %p249 = scmp.lt.s32.totalorder %s248, 7
      %s250 = scalar_select %p249, %s248, 7
      %s251 = smul.addr %s250, 8
      %s252 = scalar_lea.vmem %s0, %s251
      %s253 = smul.u32 4, %s16
      %s254 = smul.u32 4, %s16
      %p255 = scmp.lt.s32.totalorder %s254, 7
      %s256 = scalar_select %p255, %s254, 7
      %s257 = smul.addr %s256, 8
      %s258 = scalar_lea.vmem %s1, %s257
      %s259 = smul.u32 4, %s16
      %s260 = smul.u32 4, %s16
      %p261 = scmp.lt.s32.totalorder %s260, 7
      %s262 = scalar_select %p261, %s260, 7
      %s263 = smul.addr %s262, 8
      %s264 = scalar_lea.vmem %s2, %s263
      %s265 = smul.u32 4, %s16
      %s266 = smul.u32 4, %s16
      %p267 = scmp.lt.s32.totalorder %s266, 7
      %s268 = scalar_select %p267, %s266, 7
      %s269 = smul.addr %s268, 8
      %s270 = scalar_lea.vmem %s5, %s269
      %s271 = smul.u32 4, %s16
      %v273 = vld [vmem:[%s3] sm:$0xf]
      %v274 = vld [vmem:[%s3 + $0x4] sm:$0xf]
      %v275 = vld [vmem:[%s3 + $0x8] sm:$0xf]
      %v276 = vld [vmem:[%s3 + $0xc] sm:$0xf]
      %v277 = vld [vmem:[%s3 + $0x10] sm:$0xf]
      %v278 = vld [vmem:[%s3 + $0x14] sm:$0xf]
      %v279 = vld [vmem:[%s3 + $0x18] sm:$0xf]
      %v280 = vld [vmem:[%s3 + $0x1c] sm:$0xf]
      %v281 = vld [vmem:[%s3 + $0x20] sm:$0xf]
      %v282 = vld [vmem:[%s3 + $0x24] sm:$0xf]
      %v283 = vld [vmem:[%s3 + $0x28] sm:$0xf]
      %v284 = vld [vmem:[%s3 + $0x2c] sm:$0xf]
      %v285 = vld [vmem:[%s3 + $0x30] sm:$0xf]
      %v286 = vld [vmem:[%s3 + $0x34] sm:$0xf]
      %v287 = vld [vmem:[%s3 + $0x38] sm:$0xf]
      %v288 = vld [vmem:[%s3 + $0x3c] sm:$0xf]
      %v289 = vld [vmem:[%s4] sm:$0xf]
      %v290 = vld [vmem:[%s4 + $0x4] sm:$0xf]
      %v291 = vld [vmem:[%s4 + $0x8] sm:$0xf]
      %v292 = vld [vmem:[%s4 + $0xc] sm:$0xf]
      %v293 = vld [vmem:[%s4 + $0x10] sm:$0xf]
      %v294 = vld [vmem:[%s4 + $0x14] sm:$0xf]
      %v295 = vld [vmem:[%s4 + $0x18] sm:$0xf]
      %v296 = vld [vmem:[%s4 + $0x1c] sm:$0xf]
      %v297 = vld [vmem:[%s4 + $0x20] sm:$0xf]
      %v298 = vld [vmem:[%s4 + $0x24] sm:$0xf]
      %v299 = vld [vmem:[%s4 + $0x28] sm:$0xf]
      %v300 = vld [vmem:[%s4 + $0x2c] sm:$0xf]
      %v301 = vld [vmem:[%s4 + $0x30] sm:$0xf]
      %v302 = vld [vmem:[%s4 + $0x34] sm:$0xf]
      %v303 = vld [vmem:[%s4 + $0x38] sm:$0xf]
      %v304 = vld [vmem:[%s4 + $0x3c] sm:$0xf]
      %v305 = vld [vmem:[%s252] sm:$0xff]
      %v306 = vld [vmem:[%s252 + $0x8] sm:$0xff]
      %v307 = vld [vmem:[%s252 + $0x10] sm:$0xff]
      %v308 = vld [vmem:[%s252 + $0x18] sm:$0xff]
      %v309 = vlaneseq
      %v310 = vand.u32 %v309, 127
      %311 = vset.pattern.permute.xlu0 0
      %312 = vperm.xlu0 %311, %v305
      %v313 = vpop.permute.xlu0 %312
      %314 = vset.pattern.permute.xlu0 0
      %315 = vperm.xlu0 %314, %v306
      %v316 = vpop.permute.xlu0 %315
      %317 = vset.pattern.permute.xlu0 0
      %318 = vperm.xlu0 %317, %v307
      %v319 = vpop.permute.xlu0 %318
      %320 = vset.pattern.permute.xlu0 0
      %321 = vperm.xlu0 %320, %v308
      %v322 = vpop.permute.xlu0 %321
      %vm323 = vcmp.eq.s32.totalorder %v313, %v310
      %vm324 = vcmp.eq.s32.totalorder %v316, %v310
      %vm325 = vcmp.eq.s32.totalorder %v319, %v310
      %vm326 = vcmp.eq.s32.totalorder %v322, %v310
      %v327 = vsel %vm323, 1, 0
      %v328 = vsel %vm324, 1, 0
      %v329 = vsel %vm325, 1, 0
      %v330 = vsel %vm326, 1, 0
      %v331 = vcvt.s32.f32 %v327
      %v332 = vcvt.s32.f32 %v328
      %v333 = vcvt.s32.f32 %v329
      %v334 = vcvt.s32.f32 %v330
      %v335 = vpack.c.bf16 %v332, %v331
      %v336 = vpack.c.bf16 %v334, %v333
      %v337 = vld [vmem:[%s258] sm:$0xff]
      %v338 = vld [vmem:[%s258 + $0x8] sm:$0xff]
      %v339 = vld [vmem:[%s258 + $0x10] sm:$0xff]
      %v340 = vld [vmem:[%s258 + $0x18] sm:$0xff]
      %341 = vset.pattern.permute.xlu0 0
      %342 = vperm.xlu0 %341, %v337
      %v343 = vpop.permute.xlu0 %342
      %344 = vset.pattern.permute.xlu0 0
      %345 = vperm.xlu0 %344, %v338
      %v346 = vpop.permute.xlu0 %345
      %347 = vset.pattern.permute.xlu0 0
      %348 = vperm.xlu0 %347, %v339
      %v349 = vpop.permute.xlu0 %348
      %350 = vset.pattern.permute.xlu0 0
      %351 = vperm.xlu0 %350, %v340
      %v352 = vpop.permute.xlu0 %351
      %vm353 = vcmp.eq.s32.totalorder %v343, %v310
      %vm354 = vcmp.eq.s32.totalorder %v346, %v310
      %vm355 = vcmp.eq.s32.totalorder %v349, %v310
      %vm356 = vcmp.eq.s32.totalorder %v352, %v310
      %v357 = vsel %vm353, 1, 0
      %v358 = vsel %vm354, 1, 0
      %v359 = vsel %vm355, 1, 0
      %v360 = vsel %vm356, 1, 0
      %v361 = vcvt.s32.f32 %v357
      %v362 = vcvt.s32.f32 %v358
      %v363 = vcvt.s32.f32 %v359
      %v364 = vcvt.s32.f32 %v360
      %v365 = vpack.c.bf16 %v362, %v361
      %v366 = vpack.c.bf16 %v364, %v363
      %v383 = vunpack.c.l.b16 %v289
      %v384 = vunpack.c.l.b16 %v290
      %v385 = vunpack.c.l.b16 %v291
      %v386 = vunpack.c.l.b16 %v292
      %v387 = vunpack.c.l.b16 %v293
      %v388 = vunpack.c.l.b16 %v294
      %v389 = vunpack.c.l.b16 %v295
      %v390 = vunpack.c.l.b16 %v296
      %v391 = vunpack.c.l.b16 %v297
      %v392 = vunpack.c.l.b16 %v298
      %v393 = vunpack.c.l.b16 %v299
      %v394 = vunpack.c.l.b16 %v300
      %v395 = vunpack.c.l.b16 %v301
      %v396 = vunpack.c.l.b16 %v302
      %v397 = vunpack.c.l.b16 %v303
      %v398 = vunpack.c.l.b16 %v304
      %v399 = vpack.c.b16 %v384, %v383
      %v400 = vpack.c.b16 %v386, %v385
      %v401 = vpack.c.b16 %v388, %v387
      %v402 = vpack.c.b16 %v390, %v389
      %v403 = vpack.c.b16 %v392, %v391
      %v404 = vpack.c.b16 %v394, %v393
      %v405 = vpack.c.b16 %v396, %v395
      %v406 = vpack.c.b16 %v398, %v397
      %415 = vmatprep.subr.bf16.mxu0 0
      %416 = vmatpush1.bf16.msra.mxu0 %v406
      %417 = vmatprep.subr.bf16.mxu0 0
      %418 = vmatpush1.bf16.msra.mxu0 %v405
      %419 = vmatprep.subr.bf16.mxu0 0
      %420 = vmatpush1.bf16.msra.mxu0 %v404
      %421 = vmatprep.subr.bf16.mxu0 0
      %422 = vmatpush1.bf16.msra.mxu0 %v403
      %423 = vmatprep.subr.bf16.mxu0 0
      %424 = vmatpush1.bf16.msra.mxu0 %v402
      %425 = vmatprep.subr.bf16.mxu0 0
      %426 = vmatpush1.bf16.msra.mxu0 %v401
      %427 = vmatprep.subr.bf16.mxu0 0
      %428 = vmatpush1.bf16.msra.mxu0 %v400
      %429 = vmatprep.subr.bf16.mxu0 0
      %430 = vmatpush1.bf16.msra.mxu0 %v399
      %431 = vmatprep.subr.bf16.mxu0 0
      %432 = vmatpush2.bf16.msra.mxu0 0
      %433 = vmatprep.subr.bf16.mxu0 0
      %434 = vmatpush2.bf16.msra.mxu0 0
      %435 = vmatprep.subr.bf16.mxu0 0
      %436 = vmatpush2.bf16.msra.mxu0 0
      %437 = vmatprep.subr.bf16.mxu0 0
      %438 = vmatpush2.bf16.msra.mxu0 0
      %439 = vmatprep.subr.bf16.mxu0 0
      %440 = vmatpush2.bf16.msra.mxu0 0
      %441 = vmatprep.subr.bf16.mxu0 0
      %442 = vmatpush2.bf16.msra.mxu0 0
      %443 = vmatprep.subr.bf16.mxu0 0
      %444 = vmatpush2.bf16.msra.mxu0 0
      %445 = vmatprep.subr.bf16.mxu0 0
      %446 = vmatpush2.bf16.msra.mxu0 0
      %447 = vmatprep.mubr.bf16.mxu0 0
      %448 = vmatmul.mubr.bf16.gmra.mxu0 %v365
      %v449 = vpop.f32.mrf.mxu0
      %v450 = vadd.f32 0.0, %v449
      %v451 = vpop.f32.mrf.mxu0
      %v452 = vpop.f32.mrf.mxu0
      %v453 = vadd.f32 0.0, %v452
      %v454 = vpop.f32.mrf.mxu0
      %455 = vmatprep.mubr.bf16.mxu0 0
      %456 = vmatmul.mubr.bf16.gmra.mxu0 %v366
      %v457 = vpop.f32.mrf.mxu0
      %v458 = vadd.f32 0.0, %v457
      %v459 = vpop.f32.mrf.mxu0
      %v460 = vpop.f32.mrf.mxu0
      %v461 = vadd.f32 0.0, %v460
      %v462 = vpop.f32.mrf.mxu0
      %463 = vdwg.mxu0
      %v464 = vld [vmem:[%s264] sm:$0xff]
      %v465 = vld [vmem:[%s264 + $0x8] sm:$0xff]
      %v466 = vld [vmem:[%s264 + $0x10] sm:$0xff]
      %v467 = vld [vmem:[%s264 + $0x18] sm:$0xff]
      %468 = vset.pattern.permute.xlu0 0
      %469 = vperm.xlu0 %468, %v464
      %v470 = vpop.permute.xlu0 %469
      %471 = vset.pattern.permute.xlu0 0
      %472 = vperm.xlu0 %471, %v465
      %v473 = vpop.permute.xlu0 %472
      %474 = vset.pattern.permute.xlu0 0
      %475 = vperm.xlu0 %474, %v466
      %v476 = vpop.permute.xlu0 %475
      %477 = vset.pattern.permute.xlu0 0
      %478 = vperm.xlu0 %477, %v467
      %v479 = vpop.permute.xlu0 %478
      %vm480 = vcmp.eq.s32.totalorder %v470, %v310
      %vm481 = vcmp.eq.s32.totalorder %v473, %v310
      %vm482 = vcmp.eq.s32.totalorder %v476, %v310
      %vm483 = vcmp.eq.s32.totalorder %v479, %v310
      %v484 = vsel %vm480, 1, 0
      %v485 = vsel %vm481, 1, 0
      %v486 = vsel %vm482, 1, 0
      %v487 = vsel %vm483, 1, 0
      %v488 = vcvt.s32.f32 %v484
      %v489 = vcvt.s32.f32 %v485
      %v490 = vcvt.s32.f32 %v486
      %v491 = vcvt.s32.f32 %v487
      %v492 = vpack.c.bf16 %v489, %v488
      %v493 = vpack.c.bf16 %v491, %v490
      %v510 = vunpack.c.l.b16 %v273
      %v511 = vunpack.c.l.b16 %v274
      %v512 = vunpack.c.l.b16 %v275
      %v513 = vunpack.c.l.b16 %v276
      %v514 = vunpack.c.l.b16 %v277
      %v515 = vunpack.c.l.b16 %v278
      %v516 = vunpack.c.l.b16 %v279
      %v517 = vunpack.c.l.b16 %v280
      %v518 = vunpack.c.l.b16 %v281
      %v519 = vunpack.c.l.b16 %v282
      %v520 = vunpack.c.l.b16 %v283
      %v521 = vunpack.c.l.b16 %v284
      %v522 = vunpack.c.l.b16 %v285
      %v523 = vunpack.c.l.b16 %v286
      %v524 = vunpack.c.l.b16 %v287
      %v525 = vunpack.c.l.b16 %v288
      %v526 = vpack.c.b16 %v511, %v510
      %v527 = vpack.c.b16 %v513, %v512
      %v528 = vpack.c.b16 %v515, %v514
      %v529 = vpack.c.b16 %v517, %v516
      %v530 = vpack.c.b16 %v519, %v518
      %v531 = vpack.c.b16 %v521, %v520
      %v532 = vpack.c.b16 %v523, %v522
      %v533 = vpack.c.b16 %v525, %v524
      %542 = vmatprep.subr.bf16.mxu0 0
      %543 = vmatpush1.bf16.msra.mxu0 %v533
      %544 = vmatprep.subr.bf16.mxu0 0
      %545 = vmatpush1.bf16.msra.mxu0 %v532
      %546 = vmatprep.subr.bf16.mxu0 0
      %547 = vmatpush1.bf16.msra.mxu0 %v531
      %548 = vmatprep.subr.bf16.mxu0 0
      %549 = vmatpush1.bf16.msra.mxu0 %v530
      %550 = vmatprep.subr.bf16.mxu0 0
      %551 = vmatpush1.bf16.msra.mxu0 %v529
      %552 = vmatprep.subr.bf16.mxu0 0
      %553 = vmatpush1.bf16.msra.mxu0 %v528
      %554 = vmatprep.subr.bf16.mxu0 0
      %555 = vmatpush1.bf16.msra.mxu0 %v527
      %556 = vmatprep.subr.bf16.mxu0 0
      %557 = vmatpush1.bf16.msra.mxu0 %v526
      %558 = vmatprep.subr.bf16.mxu0 0
      %559 = vmatpush2.bf16.msra.mxu0 0
      %560 = vmatprep.subr.bf16.mxu0 0
      %561 = vmatpush2.bf16.msra.mxu0 0
      %562 = vmatprep.subr.bf16.mxu0 0
      %563 = vmatpush2.bf16.msra.mxu0 0
      %564 = vmatprep.subr.bf16.mxu0 0
      %565 = vmatpush2.bf16.msra.mxu0 0
      %566 = vmatprep.subr.bf16.mxu0 0
      %567 = vmatpush2.bf16.msra.mxu0 0
      %568 = vmatprep.subr.bf16.mxu0 0
      %569 = vmatpush2.bf16.msra.mxu0 0
      %570 = vmatprep.subr.bf16.mxu0 0
      %571 = vmatpush2.bf16.msra.mxu0 0
      %572 = vmatprep.subr.bf16.mxu0 0
      %573 = vmatpush2.bf16.msra.mxu0 0
      %574 = vmatprep.mubr.bf16.mxu0 0
      %575 = vmatmul.mubr.bf16.gmra.mxu0 %v492
      %v576 = vpop.f32.mrf.mxu0
      %v577 = vadd.f32 0.0, %v576
      %v578 = vpop.f32.mrf.mxu0
      %v579 = vpop.f32.mrf.mxu0
      %v580 = vadd.f32 0.0, %v579
      %v581 = vpop.f32.mrf.mxu0
      %582 = vmatprep.mubr.bf16.mxu0 0
      %583 = vmatmul.mubr.bf16.gmra.mxu0 %v493
      %v584 = vpop.f32.mrf.mxu0
      %v585 = vadd.f32 0.0, %v584
      %v586 = vpop.f32.mrf.mxu0
      %v587 = vpop.f32.mrf.mxu0
      %v588 = vadd.f32 0.0, %v587
      %v589 = vpop.f32.mrf.mxu0
      %590 = vdwg.mxu0
      %591 = vmatprep.subr.bf16.mxu0 0
      %592 = vmatpush1.bf16.msra.mxu0 %v533
      %593 = vmatprep.subr.bf16.mxu0 0
      %594 = vmatpush1.bf16.msra.mxu0 %v532
      %595 = vmatprep.subr.bf16.mxu0 0
      %596 = vmatpush1.bf16.msra.mxu0 %v531
      %597 = vmatprep.subr.bf16.mxu0 0
      %598 = vmatpush1.bf16.msra.mxu0 %v530
      %599 = vmatprep.subr.bf16.mxu0 0
      %600 = vmatpush1.bf16.msra.mxu0 %v529
      %601 = vmatprep.subr.bf16.mxu0 0
      %602 = vmatpush1.bf16.msra.mxu0 %v528
      %603 = vmatprep.subr.bf16.mxu0 0
      %604 = vmatpush1.bf16.msra.mxu0 %v527
      %605 = vmatprep.subr.bf16.mxu0 0
      %606 = vmatpush1.bf16.msra.mxu0 %v526
      %607 = vmatprep.subr.bf16.mxu0 0
      %608 = vmatpush2.bf16.msra.mxu0 0
      %609 = vmatprep.subr.bf16.mxu0 0
      %610 = vmatpush2.bf16.msra.mxu0 0
      %611 = vmatprep.subr.bf16.mxu0 0
      %612 = vmatpush2.bf16.msra.mxu0 0
      %613 = vmatprep.subr.bf16.mxu0 0
      %614 = vmatpush2.bf16.msra.mxu0 0
      %615 = vmatprep.subr.bf16.mxu0 0
      %616 = vmatpush2.bf16.msra.mxu0 0
      %617 = vmatprep.subr.bf16.mxu0 0
      %618 = vmatpush2.bf16.msra.mxu0 0
      %619 = vmatprep.subr.bf16.mxu0 0
      %620 = vmatpush2.bf16.msra.mxu0 0
      %621 = vmatprep.subr.bf16.mxu0 0
      %622 = vmatpush2.bf16.msra.mxu0 0
      %623 = vmatprep.mubr.bf16.mxu0 0
      %624 = vmatmul.mubr.bf16.gmra.mxu0 %v335
      %v625 = vpop.f32.mrf.mxu0
      %v626 = vadd.f32 %v450, %v625
      %v627 = vpop.f32.mrf.mxu0
      %v628 = vpop.f32.mrf.mxu0
      %v629 = vadd.f32 %v453, %v628
      %v630 = vpop.f32.mrf.mxu0
      %631 = vmatprep.mubr.bf16.mxu0 0
      %632 = vmatmul.mubr.bf16.gmra.mxu0 %v336
      %v633 = vpop.f32.mrf.mxu0
      %v634 = vadd.f32 %v458, %v633
      %v635 = vpop.f32.mrf.mxu0
      %v636 = vpop.f32.mrf.mxu0
      %v637 = vadd.f32 %v461, %v636
      %v638 = vpop.f32.mrf.mxu0
      %639 = vdwg.mxu0
      %v640 = vsub.f32 %v626, %v577
      %v641 = vsub.f32 %v629, %v580
      %v642 = vsub.f32 %v634, %v585
      %v643 = vsub.f32 %v637, %v588
      %v644 = vmul.f32 %v640, %v640
      %v645 = vmul.f32 %v641, %v641
      %v646 = vmul.f32 %v642, %v642
      %v647 = vmul.f32 %v643, %v643
      %648 = vadd.xlane.f32.xlu0 %v644
      %v649 = vpop.xlane.xlu0 %648
      %650 = vadd.xlane.f32.xlu0 %v645
      %v651 = vpop.xlane.xlu0 %650
      %652 = vadd.xlane.f32.xlu0 %v646
      %v653 = vpop.xlane.xlu0 %652
      %654 = vadd.xlane.f32.xlu0 %v647
      %v655 = vpop.xlane.xlu0 %654
      %v656 = vrsqrt.pop %v649
      %v657 = vmul.f32 %v649, %v656
      %vm658 = vcmp.eq.f32.partialorder %v649, inf
      %v659 = vsel %vm658, %v649, %v657
      %vm660 = vcmp.eq.f32.partialorder %v649, 0.0
      %v661 = vand.u32 %v649, 2147483648
      %v662 = vsel %vm660, %v661, %v659
      %v663 = vrsqrt.pop %v651
      %v664 = vmul.f32 %v651, %v663
      %vm665 = vcmp.eq.f32.partialorder %v651, inf
      %v666 = vsel %vm665, %v651, %v664
      %vm667 = vcmp.eq.f32.partialorder %v651, 0.0
      %v668 = vand.u32 %v651, 2147483648
      %v669 = vsel %vm667, %v668, %v666
      %v670 = vrsqrt.pop %v653
      %v671 = vmul.f32 %v653, %v670
      %vm672 = vcmp.eq.f32.partialorder %v653, inf
      %v673 = vsel %vm672, %v653, %v671
      %vm674 = vcmp.eq.f32.partialorder %v653, 0.0
      %v675 = vand.u32 %v653, 2147483648
      %v676 = vsel %vm674, %v675, %v673
      %v677 = vrsqrt.pop %v655
      %v678 = vmul.f32 %v655, %v677
      %vm679 = vcmp.eq.f32.partialorder %v655, inf
      %v680 = vsel %vm679, %v655, %v678
      %vm681 = vcmp.eq.f32.partialorder %v655, 0.0
      %v682 = vand.u32 %v655, 2147483648
      %v683 = vsel %vm681, %v682, %v680
      %vm684 = vcmask 7168
      %685 = vst.msk [vmem:[%s270] sm:$0xff] %vm684, %v662
      %686 = vst.msk [vmem:[%s270 + $0x8] sm:$0xff] %vm684, %v669
      %687 = vst.msk [vmem:[%s270 + $0x10] sm:$0xff] %vm684, %v676
      %688 = vst.msk [vmem:[%s270 + $0x18] sm:$0xff] %vm684, %v683
      %s689 = smul.u32 4, %s16
      %p690 = scmp.lt.s32.totalorder %s689, 7
      %s691 = scalar_select %p690, %s689, 7
      %s692 = smul.addr %s691, 8
      %s693 = scalar_lea.vmem %s5, %s692
      // Predicated region
      $region41: #{transe_distances.1} parent=39 // pred_check
        %p694 = pneg %p154
      $region42: #{transe_distances.1} parent=39 // pred_check_branch
        %696 = sbr.rel (%p694) target = $region44
      $region43: #{transe_distances.1} parent=39 // pred_region
        %s697 = smul.u32 4, %s16
      $region44: #{transe_distances.1} parent=39 // pred_fallthru
        _
    $region40: #{transe_distances.1} parent=5 // pred_fallthru
      _
    %p698 = scmp.le.s32.totalorder 2, %s11
    // Predicated region
    $region45: #{transe_distances.1} parent=5 // pred_check
      %p699 = pneg %p698
    $region46: #{transe_distances.1} parent=5 // pred_check_branch
      %701 = sbr.rel (%p699) target = $region48
    $region47: #{transe_distances.1} parent=5 // pred_region
      %s702 = ssub.s32 %s11, 2
      // Predicated region
      $region49: #{transe_distances.1} parent=47 // pred_check
        %p703 = pneg %p160
      $region50: #{transe_distances.1} parent=47 // pred_check_branch
        %705 = sbr.rel (%p703) target = $region52
      $region51: #{transe_distances.1} parent=47 // pred_region
        %s706 = smul.u32 4, %s17
        %p707 = scmp.lt.s32.totalorder %s706, 7
        %s708 = scalar_select %p707, %s706, 7
        %s709 = smul.addr %s708, 8
        %s710 = scalar_lea.vmem %s5, %s709
      $region52: #{transe_distances.1} parent=47 // pred_fallthru
        _
    $region48: #{transe_distances.1} parent=5 // pred_fallthru
      _
  $region6: #{transe_distances.1} parent=0 // loop_footer
    %s15 = sadd.s32 1, %s11
  $region7: #{transe_distances.1} parent=0 // loop_footer_branch
    %10 = sbr.rel target = $region3
  $region8: #{transe_distances.1} parent=0 // loop_exit
    _

</llo_original>
